<compile_context>
chip_gen: v5e
topology: v5e:2x2
jax: 0.10.0
libtpu: 0.0.40
codegen_flags: <defaults>
</compile_context>

<pallas_src>
from functools import partial
from typing import Dict, List, Optional, Tuple

import jax
import jax.numpy as jnp
from jax.experimental import pallas as pl
from jax.experimental.pallas import tpu as pltpu


_DEFAULT_BLOCK_N_VMEM = 2048   # ids per grid step, VMEM-resident gather
_DEFAULT_BLOCK_N_HBM = 1024    # ids per grid step, HBM row-streaming gather
_HBM_DMA_SLOTS = 8             # outstanding row DMAs on the streaming path

_CACHED_BUDGET: Optional[Tuple[int, int]] = None


def _vmem_budget() -> Tuple[int, int]:
    """(vmem_limit_bytes cap, table-residency byte limit), per TPU generation."""
    global _CACHED_BUDGET
    if _CACHED_BUDGET is None:
        try:
            cap = int(pltpu.get_tpu_info().vmem_capacity_bytes)
        except Exception:
            cap = 64 << 20                      # conservative (v7x-class) default
        if cap > (96 << 20):                    # v5e / v6e: 128 MiB per core
            _CACHED_BUDGET = (96 << 20, 40 << 20)
        else:                                   # v7x: 64 MiB per TensorCore
            _CACHED_BUDGET = (48 << 20, 12 << 20)
    return _CACHED_BUDGET


def _round_up(x: int, m: int) -> int:
    return ((x + m - 1) // m) * m


def _pack_factor(dim: int) -> int:
    """How many `dim`-wide embedding rows pack into one 128-lane output row."""
    if dim < 128 and 128 % dim == 0:
        return 128 // dim
    return 1


# ----------------------------------------------------------------------------
# Kernel A: table resident in VMEM, lane-packed row gather
# ----------------------------------------------------------------------------
def _gather_vmem_kernel(ids_ref, table_ref, out_ref):
    # ids_ref  : SMEM [N_pad] int32, ALREADY hashed to [0, vocab)
    # table_ref: VMEM [V, D] f32 (whole table, grid-invariant)
    # out_ref  : VMEM [rows, pack*D] f32 (pack ids packed along the lane axis)
    i = pl.program_id(0)
    rows, out_w = out_ref.shape
    d = table_ref.shape[1]
    pack = out_w // d
    base = i * rows * pack

    def body(r, carry):
        if pack == 1:
            idx = ids_ref[base + r]
            out_ref[pl.ds(r, 1), :] = table_ref[pl.ds(idx, 1), :]
        else:
            pieces = []
            for s in range(pack):                          # static unroll
                idx = ids_ref[base + r * pack + s]
                pieces.append(table_ref[pl.ds(idx, 1), :])  # (1, D) dynamic row
            out_ref[pl.ds(r, 1), :] = jnp.concatenate(pieces, axis=1)
        return carry

    # rows is always a multiple of 8 (blk is a multiple of 8*pack).
    jax.lax.fori_loop(0, rows, body, 0, unroll=8)


# ----------------------------------------------------------------------------
# Kernel B: table in HBM, deep-pipelined row DMAs straight into the output tile
# ----------------------------------------------------------------------------
def _gather_hbm_kernel(ids_ref, table_ref, out_ref, sem_ref):
    # ids_ref  : SMEM [N_pad] int32, ALREADY hashed to [0, vocab)
    # table_ref: HBM  [V, D] f32 (memory_space=pl.ANY, no auto-DMA)
    # out_ref  : VMEM [blk, D] f32 (DMA destination; no staging buffer)
    # sem_ref  : DMA semaphores [n_slots]
    i = pl.program_id(0)
    blk = out_ref.shape[0]
    n_slots = sem_ref.shape[0]
    base = i * blk

    def row_copy(r):
        # Reconstructed identically at start() and wait() time (same src slice,
        # same dst slice, same semaphore slot).
        idx = ids_ref[base + r]
        return pltpu.make_async_copy(
            table_ref.at[pl.ds(idx, 1), :],
            out_ref.at[pl.ds(r, 1), :],
            sem_ref.at[r % n_slots])

    # Prime the pipeline: n_slots row DMAs in flight (blk >= n_slots always).
    for r in range(n_slots):                               # static
        row_copy(r).start()

    def body(r, carry):
        row_copy(r).wait()

        @pl.when(r + n_slots < blk)
        def _():
            row_copy(r + n_slots).start()                  # reuses the slot just freed
        return carry

    jax.lax.fori_loop(0, blk, body, 0)


# ----------------------------------------------------------------------------
# Wrapper: one fused lookup per (super-)table
# ----------------------------------------------------------------------------
@partial(jax.jit, static_argnames=("table_in_vmem", "block_n", "vmem_cap"))
def _lookup_impl(row_ids, table, *, table_in_vmem: bool, block_n: int, vmem_cap: int):
    n = row_ids.shape[0]
    v, d = table.shape

    if table_in_vmem:
        pack = _pack_factor(d)
        unit = 8 * pack
        blk = min(block_n, _round_up(n, unit))
        blk = max(unit, (blk // unit) * unit)
        n_pad = _round_up(n, blk)
        ids_p = jnp.pad(row_ids, (0, n_pad - n))
        rows = blk // pack
        table_bytes = v * d * 4
        vmem_need = 2 * table_bytes + 2 * rows * pack * d * 4 + (4 << 20)
        out = pl.pallas_call(
            _gather_vmem_kernel,
            out_shape=jax.ShapeDtypeStruct((n_pad // pack, pack * d), jnp.float32),
            grid_spec=pltpu.PrefetchScalarGridSpec(
                num_scalar_prefetch=1,
                grid=(n_pad // blk,),
                in_specs=[pl.BlockSpec((v, d), lambda i, ids: (0, 0))],
                out_specs=pl.BlockSpec((rows, pack * d), lambda i, ids: (i, 0)),
            ),
            compiler_params=pltpu.CompilerParams(
                dimension_semantics=("parallel",),
                vmem_limit_bytes=int(min(vmem_cap, max(32 << 20, vmem_need)))),
            cost_estimate=pl.CostEstimate(
                flops=0, transcendentals=0,
                bytes_accessed=table_bytes + n_pad * 4 + 2 * n_pad * d * 4),
        )(ids_p, table)
        # Free row-major reshape of the lane-packed slab back to [N, D].
        return out.reshape(n_pad, d)[:n]

    # -------- HBM-streaming gather (large tables) --------
    blk = min(block_n, _round_up(n, 8))
    blk = max(_HBM_DMA_SLOTS, (blk // 8) * 8)
    n_pad = _round_up(n, blk)
    ids_p = jnp.pad(row_ids, (0, n_pad - n))
    out = pl.pallas_call(
        _gather_hbm_kernel,
        out_shape=jax.ShapeDtypeStruct((n_pad, d), jnp.float32),
        grid_spec=pltpu.PrefetchScalarGridSpec(
            num_scalar_prefetch=1,
            grid=(n_pad // blk,),
            in_specs=[pl.BlockSpec(memory_space=pl.ANY)],   # table stays in HBM
            out_specs=pl.BlockSpec((blk, d), lambda i, ids: (i, 0)),
            scratch_shapes=[pltpu.SemaphoreType.DMA((_HBM_DMA_SLOTS,))],
        ),
        compiler_params=pltpu.CompilerParams(
            dimension_semantics=("parallel",),
            vmem_limit_bytes=32 << 20),
        cost_estimate=pl.CostEstimate(
            flops=0, transcendentals=0,
            bytes_accessed=2 * n_pad * d * 4 + n_pad * 4),
    )(ids_p, table)
    return out[:n]


def embedding_lookup(row_ids: jnp.ndarray, table: jnp.ndarray, *,
                     table_in_vmem: bool, block_n: Optional[int] = None) -> jnp.ndarray:
    """Gather table[row_ids] on TPU; row_ids must already be valid row indices."""
    n = int(row_ids.shape[0])
    d = int(table.shape[1])
    if n == 0:
        return jnp.zeros((0, d), jnp.float32)
    vmem_cap, _ = _vmem_budget()
    if block_n is None:
        block_n = _DEFAULT_BLOCK_N_VMEM if table_in_vmem else _DEFAULT_BLOCK_N_HBM
    return _lookup_impl(row_ids.astype(jnp.int32), table,
                        table_in_vmem=bool(table_in_vmem),
                        block_n=int(block_n), vmem_cap=int(vmem_cap))


# ----------------------------------------------------------------------------
# Minimal KeyedJaggedTensor stand-in (glue, plain JAX / Python)
# ----------------------------------------------------------------------------
class KeyedJaggedTensor:
    def __init__(self, keys: List[str], values_per_key: List[jnp.ndarray],
                 lengths_per_key: List[jnp.ndarray]):
        self._keys = list(keys)
        self._values = list(values_per_key)     # list of [n_i] int32
        self._lengths = list(lengths_per_key)   # list of [batch] int32

    def keys(self) -> List[str]:
        return self._keys

    def values(self) -> jnp.ndarray:
        return (jnp.concatenate(self._values) if self._values
                else jnp.zeros((0,), jnp.int32))

    def lengths(self) -> jnp.ndarray:
        return jnp.concatenate(self._lengths)

    def offsets(self) -> jnp.ndarray:
        lens = self.lengths()
        return jnp.concatenate([jnp.zeros((1,), lens.dtype), jnp.cumsum(lens)])

    def permute(self, order: List[int], _order_tensor=None) -> "KeyedJaggedTensor":
        return KeyedJaggedTensor(
            [self._keys[i] for i in order],
            [self._values[i] for i in order],
            [self._lengths[i] for i in order],
        )

    def split(self, group_sizes: List[int]) -> List["KeyedJaggedTensor"]:
        out, start = [], 0
        for g in group_sizes:
            out.append(KeyedJaggedTensor(self._keys[start:start + g],
                                         self._values[start:start + g],
                                         self._lengths[start:start + g]))
            start += g
        return out


# ----------------------------------------------------------------------------
# InferenceDynamicEmbeddingCollection (JAX / Pallas version)
# ----------------------------------------------------------------------------
class InferenceDynamicEmbeddingCollection:
    def __init__(self, embedding_configs: List[dict],
                 ps: Optional[object] = None, enable_cache: bool = False,
                 vmem_table_bytes_limit: Optional[int] = None):
        self._configs = embedding_configs
        _, auto_limit = _vmem_budget()
        self._table_limit = (int(vmem_table_bytes_limit)
                             if vmem_table_bytes_limit is not None else auto_limit)
        self._tables: Dict[str, jnp.ndarray] = {}
        self._vocab: Dict[str, int] = {}
        self._feature_to_table: Dict[str, str] = {}
        for t_idx, cfg in enumerate(embedding_configs):
            key = jax.random.PRNGKey(t_idx)
            self._tables[cfg["table_name"]] = jax.random.normal(
                key, (cfg["vocab_size"], cfg["dim"]), dtype=jnp.float32)
            self._vocab[cfg["table_name"]] = int(cfg["vocab_size"])
            for f in cfg["feature_names"]:
                self._feature_to_table[f] = cfg["table_name"]
        self._feature_names = [f for cfg in embedding_configs
                               for f in cfg["feature_names"]]
        self._has_uninitialized_input_dist = True
        self._features_order: List[int] = []
        self._build_fusion_plan()
        # TODO(synk): the true dynamic (insert-on-miss) hash table, the GPU-side
        # cache (enable_cache) and the ParameterServer fallback have no Pallas
        # equivalent; lookups are modelled as id % vocab into dense tables.

    def _build_fusion_plan(self):
        """Fuse same-dim VMEM-resident tables into concatenated super-tables."""
        resident, streamed = [], []
        for name, t in self._tables.items():
            (resident if t.shape[0] * t.shape[1] * 4 <= self._table_limit
             else streamed).append(name)
        self._streamed_tables = set(streamed)
        self._fused_groups: List[jnp.ndarray] = []
        self._table_to_group: Dict[str, Tuple[int, int]] = {}

        by_dim: Dict[int, List[str]] = {}
        for name in resident:
            by_dim.setdefault(int(self._tables[name].shape[1]), []).append(name)

        for _, members in by_dim.items():
            # Chunk so each fused super-table stays under the residency limit.
            chunks, cur, cur_bytes = [], [], 0
            for name in members:
                t = self._tables[name]
                b = t.shape[0] * t.shape[1] * 4
                if cur and cur_bytes + b > self._table_limit:
                    chunks.append(cur)
                    cur, cur_bytes = [], 0
                cur.append(name)
                cur_bytes += b
            if cur:
                chunks.append(cur)
            for chunk in chunks:
                arrays, off = [], 0
                gi = len(self._fused_groups)
                for name in chunk:
                    self._table_to_group[name] = (gi, off)
                    arrays.append(self._tables[name])
                    off += self._tables[name].shape[0]
                fused = arrays[0] if len(arrays) == 1 else jnp.concatenate(arrays, axis=0)
                self._fused_groups.append(fused)

    def get_input_dist(self, input_feature_names: List[str]) -> int:
        input_features_order = []
        for f in self._feature_names:
            if f in input_feature_names:
                input_features_order.append(input_feature_names.index(f))
        num_input_features = len(input_features_order)
        if (self._has_uninitialized_input_dist
                or input_features_order != self._features_order):
            self._features_order = (
                [] if input_features_order == list(range(num_input_features))
                else input_features_order)
        if self._has_uninitialized_input_dist:
            self._has_uninitialized_input_dist = False
        return num_input_features

    def forward(self, features: KeyedJaggedTensor) -> Dict[str, Dict[str, jnp.ndarray]]:
        num_input_features = self.get_input_dist(input_feature_names=features.keys())
        if self._features_order:
            features = features.permute(self._features_order)
        features = features.split([num_input_features])[0]

        results: Dict[str, Dict[str, jnp.ndarray]] = {}
        group_batches: Dict[int, List] = {}     # fused VMEM-resident groups
        streamed_batches: Dict[str, List] = {}  # per-table HBM-streaming

        for pos, key in enumerate(features._keys):
            t_name = self._feature_to_table[key]
            vocab = self._vocab[t_name]
            # Hash hoisted out of the kernel: one O(N) wrapper-side op.
            hashed = (features._values[pos] % vocab).astype(jnp.int32)
            lens = features._lengths[pos]
            if t_name in self._table_to_group:
                gi, row_off = self._table_to_group[t_name]
                group_batches.setdefault(gi, []).append((key, hashed + row_off, lens))
            else:
                streamed_batches.setdefault(t_name, []).append((key, hashed, lens))

        def _emit(entries, table, in_vmem):
            ids_list = [e[1] for e in entries]
            counts = [int(v.shape[0]) for v in ids_list]
            all_ids = ids_list[0] if len(ids_list) == 1 else jnp.concatenate(ids_list)
            emb = embedding_lookup(all_ids, table, table_in_vmem=in_vmem)
            start = 0
            for (key, _, lens), c in zip(entries, counts):
                offsets = jnp.concatenate(
                    [jnp.zeros((1,), lens.dtype), jnp.cumsum(lens)])
                results[key] = {"values": emb[start:start + c],
                                "lengths": lens, "offsets": offsets}
                start += c

        for gi, entries in group_batches.items():
            _emit(entries, self._fused_groups[gi], True)
        for t_name, entries in streamed_batches.items():
            _emit(entries, self._tables[t_name], False)

        # Preserve (permuted) feature order in the output dict.
        return {k: results[k] for k in features._keys}

    __call__ = forward


# ----------------------------------------------------------------------------
# Demo / correctness check
# ----------------------------------------------------------------------------
if __name__ == "__main__":
    embedding_configs = [
        dict(table_name="t0", dim=32, vocab_size=128, feature_names=["f_a", "f_b"]),
        dict(table_name="t1", dim=32, vocab_size=256, feature_names=["f_c"]),
    ]
    # t0 (16 KiB) takes the fused VMEM-resident path; the tiny threshold forces
    # t1 (32 KiB) onto the HBM DMA-gather path so both kernels are exercised.
    model = InferenceDynamicEmbeddingCollection(
        embedding_configs, vmem_table_bytes_limit=20 * 1024)

    # Build a small KJT (batch=2). Keys deliberately NOT in config order so the
    # get_input_dist / permute path is exercised.
    key = jax.random.PRNGKey(0)
    k_c, k_a, k_b = jax.random.split(key, 3)
    kjt = KeyedJaggedTensor(
        keys=["f_c", "f_a", "f_b"],
        values_per_key=[
            jax.random.randint(k_c, (4,), 0, 100000, dtype=jnp.int32),  # f_c: lengths [2,2]
            jax.random.randint(k_a, (5,), 0, 100000, dtype=jnp.int32),  # f_a: lengths [3,2]
            jax.random.randint(k_b, (5,), 0, 100000, dtype=jnp.int32),  # f_b: lengths [1,4]
        ],
        lengths_per_key=[
            jnp.array([2, 2], jnp.int32),
            jnp.array([3, 2], jnp.int32),
            jnp.array([1, 4], jnp.int32),
        ],
    )

    result = model(kjt)
    jax.block_until_ready(result)

    # Reference check against a plain-JAX gather.
    ok = True
    for k, ids in zip(kjt._keys, kjt._values):
        table = model._tables[model._feature_to_table[k]]
        ref = jnp.take(table, ids.astype(jnp.int32) % table.shape[0], axis=0)
        got = result[k]["values"]
        ok &= bool(jnp.allclose(got, ref, atol=1e-6, rtol=1e-6))
        ok &= got.shape == (ids.shape[0], table.shape[1]) and got.dtype == jnp.float32

    if ok:
        print("KERNEL_OK")
    else:
        print("MISMATCH")
</pallas_src>

<mosaic_0001>
module attributes {stable_mosaic.version = 11 : i64} {
  func.func @_gather_vmem_kernel(%arg0: i32, %arg1: memref<32xi32, #tpu.memory_space<smem>>, %arg2: memref<128x32xf32, #tpu.memory_space<vmem>>, %arg3: memref<8x128xf32, #tpu.memory_space<vmem>>) attributes {dimension_semantics = [#tpu.dimension_semantics<parallel>], iteration_bounds = array<i64: 1>, scalar_prefetch = 1 : i64, scratch_operands = 0 : i64, tpu.core_type = #tpu.core_type<tc>, window_params = [{pipeline_mode = #tpu.pipeline_mode<synchronous>, transform_indices = @transform_0, window_bounds = array<i64: 128, 32>}, {transform_indices = @transform_1, window_bounds = array<i64: 8, 128>}]} {
    %c8_i32 = arith.constant 8 : i32
    %0 = arith.muli %arg0, %c8_i32 : i32
    %c4_i32 = arith.constant 4 : i32
    %1 = arith.muli %0, %c4_i32 : i32
    %c0_i32 = arith.constant 0 : i32
    %c4_i32_0 = arith.constant 4 : i32
    %2 = arith.muli %c0_i32, %c4_i32_0 : i32
    %3 = arith.addi %1, %2 : i32
    %c0_i32_1 = arith.constant 0 : i32
    %4 = arith.addi %3, %c0_i32_1 : i32
    %5 = arith.index_cast %4 : i32 to index
    %6 = memref.load %arg1[%5] : memref<32xi32, #tpu.memory_space<smem>>
    %7 = arith.index_cast %6 : i32 to index
    %c0 = arith.constant 0 : index
    %8 = vector.load %arg2[%7, %c0] : memref<128x32xf32, #tpu.memory_space<vmem>>, vector<1x32xf32>
    %c4_i32_2 = arith.constant 4 : i32
    %9 = arith.muli %c0_i32, %c4_i32_2 : i32
    %10 = arith.addi %1, %9 : i32
    %c1_i32 = arith.constant 1 : i32
    %11 = arith.addi %10, %c1_i32 : i32
    %12 = arith.index_cast %11 : i32 to index
    %13 = memref.load %arg1[%12] : memref<32xi32, #tpu.memory_space<smem>>
    %14 = arith.index_cast %13 : i32 to index
    %c0_3 = arith.constant 0 : index
    %15 = vector.load %arg2[%14, %c0_3] : memref<128x32xf32, #tpu.memory_space<vmem>>, vector<1x32xf32>
    %c4_i32_4 = arith.constant 4 : i32
    %16 = arith.muli %c0_i32, %c4_i32_4 : i32
    %17 = arith.addi %1, %16 : i32
    %c2_i32 = arith.constant 2 : i32
    %18 = arith.addi %17, %c2_i32 : i32
    %19 = arith.index_cast %18 : i32 to index
    %20 = memref.load %arg1[%19] : memref<32xi32, #tpu.memory_space<smem>>
    %21 = arith.index_cast %20 : i32 to index
    %c0_5 = arith.constant 0 : index
    %22 = vector.load %arg2[%21, %c0_5] : memref<128x32xf32, #tpu.memory_space<vmem>>, vector<1x32xf32>
    %c4_i32_6 = arith.constant 4 : i32
    %23 = arith.muli %c0_i32, %c4_i32_6 : i32
    %24 = arith.addi %1, %23 : i32
    %c3_i32 = arith.constant 3 : i32
    %25 = arith.addi %24, %c3_i32 : i32
    %26 = arith.index_cast %25 : i32 to index
    %27 = memref.load %arg1[%26] : memref<32xi32, #tpu.memory_space<smem>>
    %28 = arith.index_cast %27 : i32 to index
    %c0_7 = arith.constant 0 : index
    %29 = vector.load %arg2[%28, %c0_7] : memref<128x32xf32, #tpu.memory_space<vmem>>, vector<1x32xf32>
    %30 = tpu.concatenate %8, %15, %22, %29 in 1 : vector<1x32xf32>, vector<1x32xf32>, vector<1x32xf32>, vector<1x32xf32> -> vector<1x128xf32>
    %31 = arith.index_cast %c0_i32 : i32 to index
    %c0_8 = arith.constant 0 : index
    %32 = vector.load %arg3[%31, %c0_8] : memref<8x128xf32, #tpu.memory_space<vmem>>, vector<1x128xf32>
    tpu.vector_store %arg3[%31, %c0_8], %30 {strides = array<i32>} : memref<8x128xf32, #tpu.memory_space<vmem>>, vector<1x128xf32>,
    %c1_i32_9 = arith.constant 1 : i32
    %c4_i32_10 = arith.constant 4 : i32
    %33 = arith.muli %c1_i32_9, %c4_i32_10 : i32
    %34 = arith.addi %1, %33 : i32
    %c0_i32_11 = arith.constant 0 : i32
    %35 = arith.addi %34, %c0_i32_11 : i32
    %36 = arith.index_cast %35 : i32 to index
    %37 = memref.load %arg1[%36] : memref<32xi32, #tpu.memory_space<smem>>
    %38 = arith.index_cast %37 : i32 to index
    %c0_12 = arith.constant 0 : index
    %39 = vector.load %arg2[%38, %c0_12] : memref<128x32xf32, #tpu.memory_space<vmem>>, vector<1x32xf32>
    %c4_i32_13 = arith.constant 4 : i32
    %40 = arith.muli %c1_i32_9, %c4_i32_13 : i32
    %41 = arith.addi %1, %40 : i32
    %c1_i32_14 = arith.constant 1 : i32
    %42 = arith.addi %41, %c1_i32_14 : i32
    %43 = arith.index_cast %42 : i32 to index
    %44 = memref.load %arg1[%43] : memref<32xi32, #tpu.memory_space<smem>>
    %45 = arith.index_cast %44 : i32 to index
    %c0_15 = arith.constant 0 : index
    %46 = vector.load %arg2[%45, %c0_15] : memref<128x32xf32, #tpu.memory_space<vmem>>, vector<1x32xf32>
    %c4_i32_16 = arith.constant 4 : i32
    %47 = arith.muli %c1_i32_9, %c4_i32_16 : i32
    %48 = arith.addi %1, %47 : i32
    %c2_i32_17 = arith.constant 2 : i32
    %49 = arith.addi %48, %c2_i32_17 : i32
    %50 = arith.index_cast %49 : i32 to index
    %51 = memref.load %arg1[%50] : memref<32xi32, #tpu.memory_space<smem>>
    %52 = arith.index_cast %51 : i32 to index
    %c0_18 = arith.constant 0 : index
    %53 = vector.load %arg2[%52, %c0_18] : memref<128x32xf32, #tpu.memory_space<vmem>>, vector<1x32xf32>
    %c4_i32_19 = arith.constant 4 : i32
    %54 = arith.muli %c1_i32_9, %c4_i32_19 : i32
    %55 = arith.addi %1, %54 : i32
    %c3_i32_20 = arith.constant 3 : i32
    %56 = arith.addi %55, %c3_i32_20 : i32
    %57 = arith.index_cast %56 : i32 to index
    %58 = memref.load %arg1[%57] : memref<32xi32, #tpu.memory_space<smem>>
    %59 = arith.index_cast %58 : i32 to index
    %c0_21 = arith.constant 0 : index
    %60 = vector.load %arg2[%59, %c0_21] : memref<128x32xf32, #tpu.memory_space<vmem>>, vector<1x32xf32>
    %61 = tpu.concatenate %39, %46, %53, %60 in 1 : vector<1x32xf32>, vector<1x32xf32>, vector<1x32xf32>, vector<1x32xf32> -> vector<1x128xf32>
    %62 = arith.index_cast %c1_i32_9 : i32 to index
    %c0_22 = arith.constant 0 : index
    %63 = vector.load %arg3[%62, %c0_22] : memref<8x128xf32, #tpu.memory_space<vmem>>, vector<1x128xf32>
    tpu.vector_store %arg3[%62, %c0_22], %61 {strides = array<i32>} : memref<8x128xf32, #tpu.memory_space<vmem>>, vector<1x128xf32>,
    %c2_i32_23 = arith.constant 2 : i32
    %c4_i32_24 = arith.constant 4 : i32
    %64 = arith.muli %c2_i32_23, %c4_i32_24 : i32
    %65 = arith.addi %1, %64 : i32
    %c0_i32_25 = arith.constant 0 : i32
    %66 = arith.addi %65, %c0_i32_25 : i32
    %67 = arith.index_cast %66 : i32 to index
    %68 = memref.load %arg1[%67] : memref<32xi32, #tpu.memory_space<smem>>
    %69 = arith.index_cast %68 : i32 to index
    %c0_26 = arith.constant 0 : index
    %70 = vector.load %arg2[%69, %c0_26] : memref<128x32xf32, #tpu.memory_space<vmem>>, vector<1x32xf32>
    %c4_i32_27 = arith.constant 4 : i32
    %71 = arith.muli %c2_i32_23, %c4_i32_27 : i32
    %72 = arith.addi %1, %71 : i32
    %c1_i32_28 = arith.constant 1 : i32
    %73 = arith.addi %72, %c1_i32_28 : i32
    %74 = arith.index_cast %73 : i32 to index
    %75 = memref.load %arg1[%74] : memref<32xi32, #tpu.memory_space<smem>>
    %76 = arith.index_cast %75 : i32 to index
    %c0_29 = arith.constant 0 : index
    %77 = vector.load %arg2[%76, %c0_29] : memref<128x32xf32, #tpu.memory_space<vmem>>, vector<1x32xf32>
    %c4_i32_30 = arith.constant 4 : i32
    %78 = arith.muli %c2_i32_23, %c4_i32_30 : i32
    %79 = arith.addi %1, %78 : i32
    %c2_i32_31 = arith.constant 2 : i32
    %80 = arith.addi %79, %c2_i32_31 : i32
    %81 = arith.index_cast %80 : i32 to index
    %82 = memref.load %arg1[%81] : memref<32xi32, #tpu.memory_space<smem>>
    %83 = arith.index_cast %82 : i32 to index
    %c0_32 = arith.constant 0 : index
    %84 = vector.load %arg2[%83, %c0_32] : memref<128x32xf32, #tpu.memory_space<vmem>>, vector<1x32xf32>
    %c4_i32_33 = arith.constant 4 : i32
    %85 = arith.muli %c2_i32_23, %c4_i32_33 : i32
    %86 = arith.addi %1, %85 : i32
    %c3_i32_34 = arith.constant 3 : i32
    %87 = arith.addi %86, %c3_i32_34 : i32
    %88 = arith.index_cast %87 : i32 to index
    %89 = memref.load %arg1[%88] : memref<32xi32, #tpu.memory_space<smem>>
    %90 = arith.index_cast %89 : i32 to index
    %c0_35 = arith.constant 0 : index
    %91 = vector.load %arg2[%90, %c0_35] : memref<128x32xf32, #tpu.memory_space<vmem>>, vector<1x32xf32>
    %92 = tpu.concatenate %70, %77, %84, %91 in 1 : vector<1x32xf32>, vector<1x32xf32>, vector<1x32xf32>, vector<1x32xf32> -> vector<1x128xf32>
    %93 = arith.index_cast %c2_i32_23 : i32 to index
    %c0_36 = arith.constant 0 : index
    %94 = vector.load %arg3[%93, %c0_36] : memref<8x128xf32, #tpu.memory_space<vmem>>, vector<1x128xf32>
    tpu.vector_store %arg3[%93, %c0_36], %92 {strides = array<i32>} : memref<8x128xf32, #tpu.memory_space<vmem>>, vector<1x128xf32>,
    %c3_i32_37 = arith.constant 3 : i32
    %c4_i32_38 = arith.constant 4 : i32
    %95 = arith.muli %c3_i32_37, %c4_i32_38 : i32
    %96 = arith.addi %1, %95 : i32
    %c0_i32_39 = arith.constant 0 : i32
    %97 = arith.addi %96, %c0_i32_39 : i32
    %98 = arith.index_cast %97 : i32 to index
    %99 = memref.load %arg1[%98] : memref<32xi32, #tpu.memory_space<smem>>
    %100 = arith.index_cast %99 : i32 to index
    %c0_40 = arith.constant 0 : index
    %101 = vector.load %arg2[%100, %c0_40] : memref<128x32xf32, #tpu.memory_space<vmem>>, vector<1x32xf32>
    %c4_i32_41 = arith.constant 4 : i32
    %102 = arith.muli %c3_i32_37, %c4_i32_41 : i32
    %103 = arith.addi %1, %102 : i32
    %c1_i32_42 = arith.constant 1 : i32
    %104 = arith.addi %103, %c1_i32_42 : i32
    %105 = arith.index_cast %104 : i32 to index
    %106 = memref.load %arg1[%105] : memref<32xi32, #tpu.memory_space<smem>>
    %107 = arith.index_cast %106 : i32 to index
    %c0_43 = arith.constant 0 : index
    %108 = vector.load %arg2[%107, %c0_43] : memref<128x32xf32, #tpu.memory_space<vmem>>, vector<1x32xf32>
    %c4_i32_44 = arith.constant 4 : i32
    %109 = arith.muli %c3_i32_37, %c4_i32_44 : i32
    %110 = arith.addi %1, %109 : i32
    %c2_i32_45 = arith.constant 2 : i32
    %111 = arith.addi %110, %c2_i32_45 : i32
    %112 = arith.index_cast %111 : i32 to index
    %113 = memref.load %arg1[%112] : memref<32xi32, #tpu.memory_space<smem>>
    %114 = arith.index_cast %113 : i32 to index
    %c0_46 = arith.constant 0 : index
    %115 = vector.load %arg2[%114, %c0_46] : memref<128x32xf32, #tpu.memory_space<vmem>>, vector<1x32xf32>
    %c4_i32_47 = arith.constant 4 : i32
    %116 = arith.muli %c3_i32_37, %c4_i32_47 : i32
    %117 = arith.addi %1, %116 : i32
    %c3_i32_48 = arith.constant 3 : i32
    %118 = arith.addi %117, %c3_i32_48 : i32
    %119 = arith.index_cast %118 : i32 to index
    %120 = memref.load %arg1[%119] : memref<32xi32, #tpu.memory_space<smem>>
    %121 = arith.index_cast %120 : i32 to index
    %c0_49 = arith.constant 0 : index
    %122 = vector.load %arg2[%121, %c0_49] : memref<128x32xf32, #tpu.memory_space<vmem>>, vector<1x32xf32>
    %123 = tpu.concatenate %101, %108, %115, %122 in 1 : vector<1x32xf32>, vector<1x32xf32>, vector<1x32xf32>, vector<1x32xf32> -> vector<1x128xf32>
    %124 = arith.index_cast %c3_i32_37 : i32 to index
    %c0_50 = arith.constant 0 : index
    %125 = vector.load %arg3[%124, %c0_50] : memref<8x128xf32, #tpu.memory_space<vmem>>, vector<1x128xf32>
    tpu.vector_store %arg3[%124, %c0_50], %123 {strides = array<i32>} : memref<8x128xf32, #tpu.memory_space<vmem>>, vector<1x128xf32>,
    %c4_i32_51 = arith.constant 4 : i32
    %c4_i32_52 = arith.constant 4 : i32
    %126 = arith.muli %c4_i32_51, %c4_i32_52 : i32
    %127 = arith.addi %1, %126 : i32
    %c0_i32_53 = arith.constant 0 : i32
    %128 = arith.addi %127, %c0_i32_53 : i32
    %129 = arith.index_cast %128 : i32 to index
    %130 = memref.load %arg1[%129] : memref<32xi32, #tpu.memory_space<smem>>
    %131 = arith.index_cast %130 : i32 to index
    %c0_54 = arith.constant 0 : index
    %132 = vector.load %arg2[%131, %c0_54] : memref<128x32xf32, #tpu.memory_space<vmem>>, vector<1x32xf32>
    %c4_i32_55 = arith.constant 4 : i32
    %133 = arith.muli %c4_i32_51, %c4_i32_55 : i32
    %134 = arith.addi %1, %133 : i32
    %c1_i32_56 = arith.constant 1 : i32
    %135 = arith.addi %134, %c1_i32_56 : i32
    %136 = arith.index_cast %135 : i32 to index
    %137 = memref.load %arg1[%136] : memref<32xi32, #tpu.memory_space<smem>>
    %138 = arith.index_cast %137 : i32 to index
    %c0_57 = arith.constant 0 : index
    %139 = vector.load %arg2[%138, %c0_57] : memref<128x32xf32, #tpu.memory_space<vmem>>, vector<1x32xf32>
    %c4_i32_58 = arith.constant 4 : i32
    %140 = arith.muli %c4_i32_51, %c4_i32_58 : i32
    %141 = arith.addi %1, %140 : i32
    %c2_i32_59 = arith.constant 2 : i32
    %142 = arith.addi %141, %c2_i32_59 : i32
    %143 = arith.index_cast %142 : i32 to index
    %144 = memref.load %arg1[%143] : memref<32xi32, #tpu.memory_space<smem>>
    %145 = arith.index_cast %144 : i32 to index
    %c0_60 = arith.constant 0 : index
    %146 = vector.load %arg2[%145, %c0_60] : memref<128x32xf32, #tpu.memory_space<vmem>>, vector<1x32xf32>
    %c4_i32_61 = arith.constant 4 : i32
    %147 = arith.muli %c4_i32_51, %c4_i32_61 : i32
    %148 = arith.addi %1, %147 : i32
    %c3_i32_62 = arith.constant 3 : i32
    %149 = arith.addi %148, %c3_i32_62 : i32
    %150 = arith.index_cast %149 : i32 to index
    %151 = memref.load %arg1[%150] : memref<32xi32, #tpu.memory_space<smem>>
    %152 = arith.index_cast %151 : i32 to index
    %c0_63 = arith.constant 0 : index
    %153 = vector.load %arg2[%152, %c0_63] : memref<128x32xf32, #tpu.memory_space<vmem>>, vector<1x32xf32>
    %154 = tpu.concatenate %132, %139, %146, %153 in 1 : vector<1x32xf32>, vector<1x32xf32>, vector<1x32xf32>, vector<1x32xf32> -> vector<1x128xf32>
    %155 = arith.index_cast %c4_i32_51 : i32 to index
    %c0_64 = arith.constant 0 : index
    %156 = vector.load %arg3[%155, %c0_64] : memref<8x128xf32, #tpu.memory_space<vmem>>, vector<1x128xf32>
    tpu.vector_store %arg3[%155, %c0_64], %154 {strides = array<i32>} : memref<8x128xf32, #tpu.memory_space<vmem>>, vector<1x128xf32>,
    %c5_i32 = arith.constant 5 : i32
    %c4_i32_65 = arith.constant 4 : i32
    %157 = arith.muli %c5_i32, %c4_i32_65 : i32
    %158 = arith.addi %1, %157 : i32
    %c0_i32_66 = arith.constant 0 : i32
    %159 = arith.addi %158, %c0_i32_66 : i32
    %160 = arith.index_cast %159 : i32 to index
    %161 = memref.load %arg1[%160] : memref<32xi32, #tpu.memory_space<smem>>
    %162 = arith.index_cast %161 : i32 to index
    %c0_67 = arith.constant 0 : index
    %163 = vector.load %arg2[%162, %c0_67] : memref<128x32xf32, #tpu.memory_space<vmem>>, vector<1x32xf32>
    %c4_i32_68 = arith.constant 4 : i32
    %164 = arith.muli %c5_i32, %c4_i32_68 : i32
    %165 = arith.addi %1, %164 : i32
    %c1_i32_69 = arith.constant 1 : i32
    %166 = arith.addi %165, %c1_i32_69 : i32
    %167 = arith.index_cast %166 : i32 to index
    %168 = memref.load %arg1[%167] : memref<32xi32, #tpu.memory_space<smem>>
    %169 = arith.index_cast %168 : i32 to index
    %c0_70 = arith.constant 0 : index
    %170 = vector.load %arg2[%169, %c0_70] : memref<128x32xf32, #tpu.memory_space<vmem>>, vector<1x32xf32>
    %c4_i32_71 = arith.constant 4 : i32
    %171 = arith.muli %c5_i32, %c4_i32_71 : i32
    %172 = arith.addi %1, %171 : i32
    %c2_i32_72 = arith.constant 2 : i32
    %173 = arith.addi %172, %c2_i32_72 : i32
    %174 = arith.index_cast %173 : i32 to index
    %175 = memref.load %arg1[%174] : memref<32xi32, #tpu.memory_space<smem>>
    %176 = arith.index_cast %175 : i32 to index
    %c0_73 = arith.constant 0 : index
    %177 = vector.load %arg2[%176, %c0_73] : memref<128x32xf32, #tpu.memory_space<vmem>>, vector<1x32xf32>
    %c4_i32_74 = arith.constant 4 : i32
    %178 = arith.muli %c5_i32, %c4_i32_74 : i32
    %179 = arith.addi %1, %178 : i32
    %c3_i32_75 = arith.constant 3 : i32
    %180 = arith.addi %179, %c3_i32_75 : i32
    %181 = arith.index_cast %180 : i32 to index
    %182 = memref.load %arg1[%181] : memref<32xi32, #tpu.memory_space<smem>>
    %183 = arith.index_cast %182 : i32 to index
    %c0_76 = arith.constant 0 : index
    %184 = vector.load %arg2[%183, %c0_76] : memref<128x32xf32, #tpu.memory_space<vmem>>, vector<1x32xf32>
    %185 = tpu.concatenate %163, %170, %177, %184 in 1 : vector<1x32xf32>, vector<1x32xf32>, vector<1x32xf32>, vector<1x32xf32> -> vector<1x128xf32>
    %186 = arith.index_cast %c5_i32 : i32 to index
    %c0_77 = arith.constant 0 : index
    %187 = vector.load %arg3[%186, %c0_77] : memref<8x128xf32, #tpu.memory_space<vmem>>, vector<1x128xf32>
    tpu.vector_store %arg3[%186, %c0_77], %185 {strides = array<i32>} : memref<8x128xf32, #tpu.memory_space<vmem>>, vector<1x128xf32>,
    %c6_i32 = arith.constant 6 : i32
    %c4_i32_78 = arith.constant 4 : i32
    %188 = arith.muli %c6_i32, %c4_i32_78 : i32
    %189 = arith.addi %1, %188 : i32
    %c0_i32_79 = arith.constant 0 : i32
    %190 = arith.addi %189, %c0_i32_79 : i32
    %191 = arith.index_cast %190 : i32 to index
    %192 = memref.load %arg1[%191] : memref<32xi32, #tpu.memory_space<smem>>
    %193 = arith.index_cast %192 : i32 to index
    %c0_80 = arith.constant 0 : index
    %194 = vector.load %arg2[%193, %c0_80] : memref<128x32xf32, #tpu.memory_space<vmem>>, vector<1x32xf32>
    %c4_i32_81 = arith.constant 4 : i32
    %195 = arith.muli %c6_i32, %c4_i32_81 : i32
    %196 = arith.addi %1, %195 : i32
    %c1_i32_82 = arith.constant 1 : i32
    %197 = arith.addi %196, %c1_i32_82 : i32
    %198 = arith.index_cast %197 : i32 to index
    %199 = memref.load %arg1[%198] : memref<32xi32, #tpu.memory_space<smem>>
    %200 = arith.index_cast %199 : i32 to index
    %c0_83 = arith.constant 0 : index
    %201 = vector.load %arg2[%200, %c0_83] : memref<128x32xf32, #tpu.memory_space<vmem>>, vector<1x32xf32>
    %c4_i32_84 = arith.constant 4 : i32
    %202 = arith.muli %c6_i32, %c4_i32_84 : i32
    %203 = arith.addi %1, %202 : i32
    %c2_i32_85 = arith.constant 2 : i32
    %204 = arith.addi %203, %c2_i32_85 : i32
    %205 = arith.index_cast %204 : i32 to index
    %206 = memref.load %arg1[%205] : memref<32xi32, #tpu.memory_space<smem>>
    %207 = arith.index_cast %206 : i32 to index
    %c0_86 = arith.constant 0 : index
    %208 = vector.load %arg2[%207, %c0_86] : memref<128x32xf32, #tpu.memory_space<vmem>>, vector<1x32xf32>
    %c4_i32_87 = arith.constant 4 : i32
    %209 = arith.muli %c6_i32, %c4_i32_87 : i32
    %210 = arith.addi %1, %209 : i32
    %c3_i32_88 = arith.constant 3 : i32
    %211 = arith.addi %210, %c3_i32_88 : i32
    %212 = arith.index_cast %211 : i32 to index
    %213 = memref.load %arg1[%212] : memref<32xi32, #tpu.memory_space<smem>>
    %214 = arith.index_cast %213 : i32 to index
    %c0_89 = arith.constant 0 : index
    %215 = vector.load %arg2[%214, %c0_89] : memref<128x32xf32, #tpu.memory_space<vmem>>, vector<1x32xf32>
    %216 = tpu.concatenate %194, %201, %208, %215 in 1 : vector<1x32xf32>, vector<1x32xf32>, vector<1x32xf32>, vector<1x32xf32> -> vector<1x128xf32>
    %217 = arith.index_cast %c6_i32 : i32 to index
    %c0_90 = arith.constant 0 : index
    %218 = vector.load %arg3[%217, %c0_90] : memref<8x128xf32, #tpu.memory_space<vmem>>, vector<1x128xf32>
    tpu.vector_store %arg3[%217, %c0_90], %216 {strides = array<i32>} : memref<8x128xf32, #tpu.memory_space<vmem>>, vector<1x128xf32>,
    %c7_i32 = arith.constant 7 : i32
    %c4_i32_91 = arith.constant 4 : i32
    %219 = arith.muli %c7_i32, %c4_i32_91 : i32
    %220 = arith.addi %1, %219 : i32
    %c0_i32_92 = arith.constant 0 : i32
    %221 = arith.addi %220, %c0_i32_92 : i32
    %222 = arith.index_cast %221 : i32 to index
    %223 = memref.load %arg1[%222] : memref<32xi32, #tpu.memory_space<smem>>
    %224 = arith.index_cast %223 : i32 to index
    %c0_93 = arith.constant 0 : index
    %225 = vector.load %arg2[%224, %c0_93] : memref<128x32xf32, #tpu.memory_space<vmem>>, vector<1x32xf32>
    %c4_i32_94 = arith.constant 4 : i32
    %226 = arith.muli %c7_i32, %c4_i32_94 : i32
    %227 = arith.addi %1, %226 : i32
    %c1_i32_95 = arith.constant 1 : i32
    %228 = arith.addi %227, %c1_i32_95 : i32
    %229 = arith.index_cast %228 : i32 to index
    %230 = memref.load %arg1[%229] : memref<32xi32, #tpu.memory_space<smem>>
    %231 = arith.index_cast %230 : i32 to index
    %c0_96 = arith.constant 0 : index
    %232 = vector.load %arg2[%231, %c0_96] : memref<128x32xf32, #tpu.memory_space<vmem>>, vector<1x32xf32>
    %c4_i32_97 = arith.constant 4 : i32
    %233 = arith.muli %c7_i32, %c4_i32_97 : i32
    %234 = arith.addi %1, %233 : i32
    %c2_i32_98 = arith.constant 2 : i32
    %235 = arith.addi %234, %c2_i32_98 : i32
    %236 = arith.index_cast %235 : i32 to index
    %237 = memref.load %arg1[%236] : memref<32xi32, #tpu.memory_space<smem>>
    %238 = arith.index_cast %237 : i32 to index
    %c0_99 = arith.constant 0 : index
    %239 = vector.load %arg2[%238, %c0_99] : memref<128x32xf32, #tpu.memory_space<vmem>>, vector<1x32xf32>
    %c4_i32_100 = arith.constant 4 : i32
    %240 = arith.muli %c7_i32, %c4_i32_100 : i32
    %241 = arith.addi %1, %240 : i32
    %c3_i32_101 = arith.constant 3 : i32
    %242 = arith.addi %241, %c3_i32_101 : i32
    %243 = arith.index_cast %242 : i32 to index
    %244 = memref.load %arg1[%243] : memref<32xi32, #tpu.memory_space<smem>>
    %245 = arith.index_cast %244 : i32 to index
    %c0_102 = arith.constant 0 : index
    %246 = vector.load %arg2[%245, %c0_102] : memref<128x32xf32, #tpu.memory_space<vmem>>, vector<1x32xf32>
    %247 = tpu.concatenate %225, %232, %239, %246 in 1 : vector<1x32xf32>, vector<1x32xf32>, vector<1x32xf32>, vector<1x32xf32> -> vector<1x128xf32>
    %248 = arith.index_cast %c7_i32 : i32 to index
    %c0_103 = arith.constant 0 : index
    %249 = vector.load %arg3[%248, %c0_103] : memref<8x128xf32, #tpu.memory_space<vmem>>, vector<1x128xf32>
    tpu.vector_store %arg3[%248, %c0_103], %247 {strides = array<i32>} : memref<8x128xf32, #tpu.memory_space<vmem>>, vector<1x128xf32>,
    %c8_i32_104 = arith.constant 8 : i32
    return
  }
  func.func @transform_0(%arg0: i32, %arg1: memref<32xi32, #tpu.memory_space<smem>>) -> (i32, i32) {
    %c0_i32 = arith.constant 0 : i32
    %c0_i32_0 = arith.constant 0 : i32
    %c0_i32_1 = arith.constant 0 : i32
    return %c0_i32, %c0_i32_0 : i32, i32
  }
  func.func @transform_1(%arg0: i32, %arg1: memref<32xi32, #tpu.memory_space<smem>>) -> (i32, i32) {
    %c0_i32 = arith.constant 0 : i32
    %c0_i32_0 = arith.constant 0 : i32
    return %arg0, %c0_i32 : i32, i32
  }
}

</mosaic_0001>

<llo_original>
// kernel: _lookup_impl.1
$region0: #{_lookup_impl.1}
  #allocation0 [shape = 'u32[]', space=smem, size = 0x4, offset = 0x4, fixed_abs, tag = 'smem constant byte address 0x4 - core index']
  #allocation1 [shape = 'u32[72,128]{1,0:T(1,128)}', space=vmem, size = 0x9000, scoped, tag = 'internal scratch']
  #allocation2 [shape = 's32[1]{0}', space=sflag, size = 0x4, scoped, tag = 'scoped memory for _lookup_impl.1']
  #allocation3 [shape = 'u8[512]{0}', space=smem, size = 0x200, scoped, tag = 'prefetched SMEM operand 0']
  %s0 = inlined_call_operand.vmem [shape: s32[32], index: 0, kind: input, shape index: {}]
  %s1 = inlined_call_operand.vmem [shape: f32[128,32], index: 1, kind: input, shape index: {}]
  %s2 = inlined_call_operand.vmem [shape: f32[8,128], index: 2, kind: output, shape index: {}]
  %s3 = sld [smem:[#allocation0]]
  $region14: #{_lookup_impl.1} parent=0
    _
  %s5 = ssub.s32 1, %s3
  %s6 = scalar_select 0, %s5, %s3
  %s8 = sshll.u32 %s0, 4
  %s9 = int_to_ptr.vmem [resolvable:$true] %s8
  %11 = dma.vmem_to_smem %s9, 16, [#allocation3], [#allocation2]
  %13 = dma.done [#allocation2], 16
  %14 = sfence
  // Predicated region
  $region2: #{_lookup_impl.1} parent=0 // pred_check
    _
  $region3: #{_lookup_impl.1} parent=0 // pred_check_branch
    %16 = sbr.rel (0) target = $region5
  $region4: #{_lookup_impl.1} parent=0 // pred_region
    _
  $region5: #{_lookup_impl.1} parent=0 // pred_fallthru
    _
  %s17 = smul.u32 0, 32
  %s18 = sld [smem:[#allocation3 + %s17]]
  %s19 = scalar_lea.vmem %s1, %s18
  %v20 = vld [vmem:[%s19] sm:$0x1]
  %s21 = sadd.s32 %s17, 1
  %s22 = sld [smem:[#allocation3 + %s21]]
  %s23 = scalar_lea.vmem %s1, %s22
  %v24 = vld [vmem:[%s23] sm:$0x1]
  %s25 = sadd.s32 %s17, 2
  %s26 = sld [smem:[#allocation3 + %s25]]
  %s27 = scalar_lea.vmem %s1, %s26
  %v28 = vld [vmem:[%s27] sm:$0x1]
  %s29 = sadd.s32 %s17, 3
  %s30 = sld [smem:[#allocation3 + %s29]]
  %s31 = scalar_lea.vmem %s1, %s30
  %v32 = vld [vmem:[%s31] sm:$0x1]
  %34 = vrot.lane.b32.xlu0 %v24, 32
  %v35 = vpop.permute.xlu0 %34
  %38 = vrot.lane.b32.xlu0 %v28, 64
  %v39 = vpop.permute.xlu0 %38
  %42 = vrot.lane.b32.xlu0 %v32, 96
  %v43 = vpop.permute.xlu0 %42
  %vm45 = vcmask 261120
  %v46 = vsel %vm45, %v20, %v35
  %vm47 = vcmask 523264
  %v48 = vsel %vm47, %v46, %v39
  %vm49 = vcmask 785408
  %v50 = vsel %vm49, %v48, %v43
  %51 = vst [vmem:[%s2] sm:$0x1] %v50
  %s52 = sadd.s32 %s17, 4
  %s53 = sld [smem:[#allocation3 + %s52]]
  %s54 = scalar_lea.vmem %s1, %s53
  %v55 = vld [vmem:[%s54] sm:$0x1]
  %s56 = sadd.s32 %s17, 5
  %s57 = sld [smem:[#allocation3 + %s56]]
  %s58 = scalar_lea.vmem %s1, %s57
  %v59 = vld [vmem:[%s58] sm:$0x1]
  %s60 = sadd.s32 %s17, 6
  %s61 = sld [smem:[#allocation3 + %s60]]
  %s62 = scalar_lea.vmem %s1, %s61
  %v63 = vld [vmem:[%s62] sm:$0x1]
  %s64 = sadd.s32 %s17, 7
  %s65 = sld [smem:[#allocation3 + %s64]]
  %s66 = scalar_lea.vmem %s1, %s65
  %v67 = vld [vmem:[%s66] sm:$0x1]
  %69 = vrot.lane.b32.xlu0 %v59, 32
  %v70 = vpop.permute.xlu0 %69
  %73 = vrot.lane.b32.xlu0 %v63, 64
  %v74 = vpop.permute.xlu0 %73
  %77 = vrot.lane.b32.xlu0 %v67, 96
  %v78 = vpop.permute.xlu0 %77
  %v80 = vsel %vm45, %v55, %v70
  %v81 = vsel %vm47, %v80, %v74
  %v82 = vsel %vm49, %v81, %v78
  %83 = vst [vmem:[%s2 + $0x1] sm:$0x1] %v82
  %s84 = sadd.s32 %s17, 8
  %s85 = sld [smem:[#allocation3 + %s84]]
  %s86 = scalar_lea.vmem %s1, %s85
  %v87 = vld [vmem:[%s86] sm:$0x1]
  %s88 = sadd.s32 %s17, 9
  %s89 = sld [smem:[#allocation3 + %s88]]
  %s90 = scalar_lea.vmem %s1, %s89
  %v91 = vld [vmem:[%s90] sm:$0x1]
  %s92 = sadd.s32 %s17, 10
  %s93 = sld [smem:[#allocation3 + %s92]]
  %s94 = scalar_lea.vmem %s1, %s93
  %v95 = vld [vmem:[%s94] sm:$0x1]
  %s96 = sadd.s32 %s17, 11
  %s97 = sld [smem:[#allocation3 + %s96]]
  %s98 = scalar_lea.vmem %s1, %s97
  %v99 = vld [vmem:[%s98] sm:$0x1]
  %101 = vrot.lane.b32.xlu0 %v91, 32
  %v102 = vpop.permute.xlu0 %101
  %105 = vrot.lane.b32.xlu0 %v95, 64
  %v106 = vpop.permute.xlu0 %105
  %109 = vrot.lane.b32.xlu0 %v99, 96
  %v110 = vpop.permute.xlu0 %109
  %v112 = vsel %vm45, %v87, %v102
  %v113 = vsel %vm47, %v112, %v106
  %v114 = vsel %vm49, %v113, %v110
  %115 = vst [vmem:[%s2 + $0x2] sm:$0x1] %v114
  %s116 = sadd.s32 %s17, 12
  %s117 = sld [smem:[#allocation3 + %s116]]
  %s118 = scalar_lea.vmem %s1, %s117
  %v119 = vld [vmem:[%s118] sm:$0x1]
  %s120 = sadd.s32 %s17, 13
  %s121 = sld [smem:[#allocation3 + %s120]]
  %s122 = scalar_lea.vmem %s1, %s121
  %v123 = vld [vmem:[%s122] sm:$0x1]
  %s124 = sadd.s32 %s17, 14
  %s125 = sld [smem:[#allocation3 + %s124]]
  %s126 = scalar_lea.vmem %s1, %s125
  %v127 = vld [vmem:[%s126] sm:$0x1]
  %s128 = sadd.s32 %s17, 15
  %s129 = sld [smem:[#allocation3 + %s128]]
  %s130 = scalar_lea.vmem %s1, %s129
  %v131 = vld [vmem:[%s130] sm:$0x1]
  %133 = vrot.lane.b32.xlu0 %v123, 32
  %v134 = vpop.permute.xlu0 %133
  %137 = vrot.lane.b32.xlu0 %v127, 64
  %v138 = vpop.permute.xlu0 %137
  %141 = vrot.lane.b32.xlu0 %v131, 96
  %v142 = vpop.permute.xlu0 %141
  %v144 = vsel %vm45, %v119, %v134
  %v145 = vsel %vm47, %v144, %v138
  %v146 = vsel %vm49, %v145, %v142
  %147 = vst [vmem:[%s2 + $0x3] sm:$0x1] %v146
  %s148 = sadd.s32 %s17, 16
  %s149 = sld [smem:[#allocation3 + %s148]]
  %s150 = scalar_lea.vmem %s1, %s149
  %v151 = vld [vmem:[%s150] sm:$0x1]
  %s152 = sadd.s32 %s17, 17
  %s153 = sld [smem:[#allocation3 + %s152]]
  %s154 = scalar_lea.vmem %s1, %s153
  %v155 = vld [vmem:[%s154] sm:$0x1]
  %s156 = sadd.s32 %s17, 18
  %s157 = sld [smem:[#allocation3 + %s156]]
  %s158 = scalar_lea.vmem %s1, %s157
  %v159 = vld [vmem:[%s158] sm:$0x1]
  %s160 = sadd.s32 %s17, 19
  %s161 = sld [smem:[#allocation3 + %s160]]
  %s162 = scalar_lea.vmem %s1, %s161
  %v163 = vld [vmem:[%s162] sm:$0x1]
  %165 = vrot.lane.b32.xlu0 %v155, 32
  %v166 = vpop.permute.xlu0 %165
  %169 = vrot.lane.b32.xlu0 %v159, 64
  %v170 = vpop.permute.xlu0 %169
  %173 = vrot.lane.b32.xlu0 %v163, 96
  %v174 = vpop.permute.xlu0 %173
  %v176 = vsel %vm45, %v151, %v166
  %v177 = vsel %vm47, %v176, %v170
  %v178 = vsel %vm49, %v177, %v174
  %179 = vst [vmem:[%s2 + $0x4] sm:$0x1] %v178
  %s180 = sadd.s32 %s17, 20
  %s181 = sld [smem:[#allocation3 + %s180]]
  %s182 = scalar_lea.vmem %s1, %s181
  %v183 = vld [vmem:[%s182] sm:$0x1]
  %s184 = sadd.s32 %s17, 21
  %s185 = sld [smem:[#allocation3 + %s184]]
  %s186 = scalar_lea.vmem %s1, %s185
  %v187 = vld [vmem:[%s186] sm:$0x1]
  %s188 = sadd.s32 %s17, 22
  %s189 = sld [smem:[#allocation3 + %s188]]
  %s190 = scalar_lea.vmem %s1, %s189
  %v191 = vld [vmem:[%s190] sm:$0x1]
  %s192 = sadd.s32 %s17, 23
  %s193 = sld [smem:[#allocation3 + %s192]]
  %s194 = scalar_lea.vmem %s1, %s193
  %v195 = vld [vmem:[%s194] sm:$0x1]
  %197 = vrot.lane.b32.xlu0 %v187, 32
  %v198 = vpop.permute.xlu0 %197
  %201 = vrot.lane.b32.xlu0 %v191, 64
  %v202 = vpop.permute.xlu0 %201
  %205 = vrot.lane.b32.xlu0 %v195, 96
  %v206 = vpop.permute.xlu0 %205
  %v208 = vsel %vm45, %v183, %v198
  %v209 = vsel %vm47, %v208, %v202
  %v210 = vsel %vm49, %v209, %v206
  %211 = vst [vmem:[%s2 + $0x5] sm:$0x1] %v210
  %s212 = sadd.s32 %s17, 24
  %s213 = sld [smem:[#allocation3 + %s212]]
  %s214 = scalar_lea.vmem %s1, %s213
  %v215 = vld [vmem:[%s214] sm:$0x1]
  %s216 = sadd.s32 %s17, 25
  %s217 = sld [smem:[#allocation3 + %s216]]
  %s218 = scalar_lea.vmem %s1, %s217
  %v219 = vld [vmem:[%s218] sm:$0x1]
  %s220 = sadd.s32 %s17, 26
  %s221 = sld [smem:[#allocation3 + %s220]]
  %s222 = scalar_lea.vmem %s1, %s221
  %v223 = vld [vmem:[%s222] sm:$0x1]
  %s224 = sadd.s32 %s17, 27
  %s225 = sld [smem:[#allocation3 + %s224]]
  %s226 = scalar_lea.vmem %s1, %s225
  %v227 = vld [vmem:[%s226] sm:$0x1]
  %229 = vrot.lane.b32.xlu0 %v219, 32
  %v230 = vpop.permute.xlu0 %229
  %233 = vrot.lane.b32.xlu0 %v223, 64
  %v234 = vpop.permute.xlu0 %233
  %237 = vrot.lane.b32.xlu0 %v227, 96
  %v238 = vpop.permute.xlu0 %237
  %v240 = vsel %vm45, %v215, %v230
  %v241 = vsel %vm47, %v240, %v234
  %v242 = vsel %vm49, %v241, %v238
  %243 = vst [vmem:[%s2 + $0x6] sm:$0x1] %v242
  %s244 = sadd.s32 %s17, 28
  %s245 = sld [smem:[#allocation3 + %s244]]
  %s246 = scalar_lea.vmem %s1, %s245
  %v247 = vld [vmem:[%s246] sm:$0x1]
  %s248 = sadd.s32 %s17, 29
  %s249 = sld [smem:[#allocation3 + %s248]]
  %s250 = scalar_lea.vmem %s1, %s249
  %v251 = vld [vmem:[%s250] sm:$0x1]
  %s252 = sadd.s32 %s17, 30
  %s253 = sld [smem:[#allocation3 + %s252]]
  %s254 = scalar_lea.vmem %s1, %s253
  %v255 = vld [vmem:[%s254] sm:$0x1]
  %s256 = sadd.s32 %s17, 31
  %s257 = sld [smem:[#allocation3 + %s256]]
  %s258 = scalar_lea.vmem %s1, %s257
  %v259 = vld [vmem:[%s258] sm:$0x1]
  %261 = vrot.lane.b32.xlu0 %v251, 32
  %v262 = vpop.permute.xlu0 %261
  %265 = vrot.lane.b32.xlu0 %v255, 64
  %v266 = vpop.permute.xlu0 %265
  %269 = vrot.lane.b32.xlu0 %v259, 96
  %v270 = vpop.permute.xlu0 %269
  %v272 = vsel %vm45, %v247, %v262
  %v273 = vsel %vm47, %v272, %v266
  %v274 = vsel %vm49, %v273, %v270
  %275 = vst [vmem:[%s2 + $0x7] sm:$0x1] %v274
  // Predicated region
  $region6: #{_lookup_impl.1} parent=0 // pred_check
    _
  $region7: #{_lookup_impl.1} parent=0 // pred_check_branch
    %277 = sbr.rel (0) target = $region9
  $region8: #{_lookup_impl.1} parent=0 // pred_region
    _
  $region9: #{_lookup_impl.1} parent=0 // pred_fallthru
    _
  // Predicated region
  $region10: #{_lookup_impl.1} parent=0 // pred_check
    _
  $region11: #{_lookup_impl.1} parent=0 // pred_check_branch
    %279 = sbr.rel (0) target = $region13
  $region12: #{_lookup_impl.1} parent=0 // pred_region
    _
  $region13: #{_lookup_impl.1} parent=0 // pred_fallthru
    _

</llo_original>
